<compile_context>
chip_gen: v6e
topology: v6e:2x2x1
jax: 0.10.0
libtpu: 0.0.40
codegen_flags: <defaults>
</compile_context>

<pallas_src>
import functools

import jax
import jax.numpy as jnp
from jax.experimental import pallas as pl
from jax.experimental.pallas import tpu as pltpu

BETA = 1.0
EPS = 1e-07
THRESHOLD = 0.5

LANE = 128          # lane width of the reshaped feature axis
MAX_TILE_R = 4096   # sublane rows per grid step (4096*128*4B = 2 MiB f32 block)


def _fscore_kernel(pred_ref, tgt_ref, out_ref, tp_acc, p_acc, t_acc,
                   *, beta, eps, threshold, tile_r, r_total):
    k = pl.program_id(1)

    @pl.when(k == 0)
    def _init():
        tp_acc[...] = jnp.zeros_like(tp_acc)
        p_acc[...] = jnp.zeros_like(p_acc)
        t_acc[...] = jnp.zeros_like(t_acc)

    # Threshold + cast inside the kernel (inputs keep their original dtype).
    if threshold is not None:
        pred = (pred_ref[...] > threshold).astype(jnp.float32)
    else:
        pred = pred_ref[...].astype(jnp.float32)
    tgt = tgt_ref[...].astype(jnp.float32)

    # Mask tail rows of the last chunk when tile_r does not divide R:
    # out-of-bounds rows of a partial block contain unspecified data.
    if r_total % tile_r != 0:
        row = jax.lax.broadcasted_iota(jnp.int32, (tile_r, LANE), 0)
        valid = (k * tile_r + row) < r_total
        pred = jnp.where(valid, pred, 0.0)
        tgt = jnp.where(valid, tgt, 0.0)

    # Pure element-wise accumulation (VALU, co-issued under the DMA).
    tp_acc[...] += pred * tgt
    p_acc[...] += pred
    t_acc[...] += tgt

    @pl.when(k == pl.num_programs(1) - 1)
    def _finalize():
        tp = jnp.sum(tp_acc[...])
        p = jnp.sum(p_acc[...])
        t = jnp.sum(t_acc[...])
        b2 = beta * beta
        # (1+b2)*tp + b2*fn + fp + eps  ==  b2*t + p + eps
        fs = ((1.0 + b2) * tp + eps) / (b2 * t + p + eps)
        out_ref[...] = jnp.zeros_like(out_ref) + fs


def fscore_batch(prediction, target, *, beta=BETA, eps=EPS,
                 threshold=THRESHOLD, per_image=True, reduction="none"):
    """Pallas implementation of FScoreBatch.run (forward)."""
    batch_size = target.shape[0]
    if not per_image:
        batch_size = 1

    # Blended-target path (shape mismatch), as in the PyTorch module.
    # TODO(synk): fuse this blend into the streaming kernel to save one HBM pass.
    if prediction.shape != target.shape:
        target1, target2 = target[:, 0], target[:, 1]
        t = target[:, 2]
        target = t * target1 + (1.0 - t) * target2

    pred2d = prediction.reshape(batch_size, -1)
    tgt2d = target.reshape(batch_size, -1)
    B, N = pred2d.shape

    # View the flattened axis as (R, 128). Pad only if N is not lane-aligned;
    # zero padding is neutral for both sums ((0 > 0.5) -> 0, target 0 adds 0).
    n_pad = (-N) % LANE
    if n_pad:
        pred2d = jnp.pad(pred2d, ((0, 0), (0, n_pad)))
        tgt2d = jnp.pad(tgt2d, ((0, 0), (0, n_pad)))
    r_total = (N + n_pad) // LANE

    pred3 = pred2d.reshape(B, r_total, LANE)
    tgt3 = tgt2d.reshape(B, r_total, LANE)

    tile_r = min(r_total, MAX_TILE_R)
    n_k = pl.cdiv(r_total, tile_r)

    kernel = functools.partial(
        _fscore_kernel, beta=float(beta), eps=float(eps),
        threshold=None if threshold is None else float(threshold),
        tile_r=tile_r, r_total=r_total)

    out = pl.pallas_call(
        kernel,
        out_shape=jax.ShapeDtypeStruct((B, 1, LANE), jnp.float32),
        grid_spec=pltpu.PrefetchScalarGridSpec(
            num_scalar_prefetch=0,
            grid=(B, n_k),
            in_specs=[
                pl.BlockSpec((None, tile_r, LANE), lambda b, k: (b, k, 0)),
                pl.BlockSpec((None, tile_r, LANE), lambda b, k: (b, k, 0)),
            ],
            out_specs=pl.BlockSpec((None, 1, LANE), lambda b, k: (b, 0, 0)),
            scratch_shapes=[
                pltpu.VMEM((tile_r, LANE), jnp.float32),
                pltpu.VMEM((tile_r, LANE), jnp.float32),
                pltpu.VMEM((tile_r, LANE), jnp.float32),
            ],
        ),
        compiler_params=pltpu.CompilerParams(
            dimension_semantics=("parallel", "arbitrary"),
            vmem_limit_bytes=32 * 1024 * 1024,
        ),
    )(pred3, tgt3)

    fscores = out[:, 0, 0]  # shape (B,)

    if reduction == "mean":
        return jnp.mean(fscores)
    elif reduction == "sum":
        return jnp.sum(fscores)
    return fscores


def _reference(prediction, target, *, beta=BETA, eps=EPS,
               threshold=THRESHOLD, per_image=True):
    pred = (prediction > threshold).astype(jnp.float32)
    tgt = target.astype(jnp.float32)
    B = target.shape[0] if per_image else 1
    pred = pred.reshape(B, -1)
    tgt = tgt.reshape(B, -1)
    tp = jnp.sum(pred * tgt, axis=1)
    fp = jnp.sum(pred, axis=1) - tp
    fn = jnp.sum(tgt, axis=1) - tp
    b2 = beta * beta
    return ((1.0 + b2) * tp + eps) / ((1.0 + b2) * tp + b2 * fn + fp + eps)


if __name__ == "__main__":
    key = jax.random.PRNGKey(0)
    k1, k2 = jax.random.split(key)

    B, C, H, W = 2, 4, 16, 16
    prediction = jax.random.uniform(k1, (B, C, H, W), dtype=jnp.float32)
    target = (jax.random.uniform(k2, (B, C, H, W)) > 0.5).astype(jnp.float32)

    out = fscore_batch(prediction, target)
    out = jax.block_until_ready(out)

    ref = _reference(prediction, target)
    assert out.shape == (B,), out.shape
    assert jnp.allclose(out, ref, atol=1e-5, rtol=1e-5), (out, ref)

    print("KERNEL_OK")
</pallas_src>

<mosaic_0001>
module attributes {stable_mosaic.version = 11 : i64} {
  func.func @_fscore_kernel(%arg0: i32, %arg1: i32, %arg2: memref<1x8x128xf32, #tpu.memory_space<vmem>>, %arg3: memref<1x8x128xf32, #tpu.memory_space<vmem>>, %arg4: memref<1x1x128xf32, #tpu.memory_space<vmem>>, %arg5: memref<8x128xf32, #tpu.memory_space<vmem>>, %arg6: memref<8x128xf32, #tpu.memory_space<vmem>>, %arg7: memref<8x128xf32, #tpu.memory_space<vmem>>) attributes {dimension_semantics = [#tpu.dimension_semantics<parallel>, #tpu.dimension_semantics<arbitrary>], iteration_bounds = array<i64: 2, 1>, scalar_prefetch = 0 : i64, scratch_operands = 3 : i64, tpu.core_type = #tpu.core_type<tc>, window_params = [{transform_indices = @transform_0, window_bounds = array<i64: 1, 8, 128>}, {transform_indices = @transform_1, window_bounds = array<i64: 1, 8, 128>}, {transform_indices = @transform_2, window_bounds = array<i64: 1, 1, 128>}]} {
    %c0_i32 = arith.constant 0 : i32
    %0 = arith.cmpi eq, %arg1, %c0_i32 : i32
    %1 = arith.extui %0 : i1 to i32
    %c0_i32_0 = arith.constant 0 : i32
    %2 = arith.cmpi ne, %1, %c0_i32_0 : i32
    scf.if %2 {
      %cst_20 = arith.constant 0.000000e+00 : f32
      %24 = vector.broadcast %cst_20 : f32 to vector<8x128xf32>
      %c0_21 = arith.constant 0 : index
      %c0_22 = arith.constant 0 : index
      %25 = vector.load %arg5[%c0_21, %c0_22] : memref<8x128xf32, #tpu.memory_space<vmem>>, vector<8x128xf32>
      tpu.vector_store %arg5[%c0_21, %c0_22], %24 {strides = array<i32>} : memref<8x128xf32, #tpu.memory_space<vmem>>, vector<8x128xf32>,
      %cst_23 = arith.constant 0.000000e+00 : f32
      %26 = vector.broadcast %cst_23 : f32 to vector<8x128xf32>
      %c0_24 = arith.constant 0 : index
      %c0_25 = arith.constant 0 : index
      %27 = vector.load %arg6[%c0_24, %c0_25] : memref<8x128xf32, #tpu.memory_space<vmem>>, vector<8x128xf32>
      tpu.vector_store %arg6[%c0_24, %c0_25], %26 {strides = array<i32>} : memref<8x128xf32, #tpu.memory_space<vmem>>, vector<8x128xf32>,
      %cst_26 = arith.constant 0.000000e+00 : f32
      %28 = vector.broadcast %cst_26 : f32 to vector<8x128xf32>
      %c0_27 = arith.constant 0 : index
      %c0_28 = arith.constant 0 : index
      %29 = vector.load %arg7[%c0_27, %c0_28] : memref<8x128xf32, #tpu.memory_space<vmem>>, vector<8x128xf32>
      tpu.vector_store %arg7[%c0_27, %c0_28], %28 {strides = array<i32>} : memref<8x128xf32, #tpu.memory_space<vmem>>, vector<8x128xf32>,
    } else {
    }
    %c0 = arith.constant 0 : index
    %c0_1 = arith.constant 0 : index
    %c0_2 = arith.constant 0 : index
    %3 = vector.load %arg2[%c0, %c0_1, %c0_2] : memref<1x8x128xf32, #tpu.memory_space<vmem>>, vector<1x8x128xf32>
    %4 = vector.shape_cast %3 : vector<1x8x128xf32> to vector<8x128xf32>
    %cst = arith.constant 5.000000e-01 : f32
    %5 = vector.broadcast %cst : f32 to vector<8x128xf32>
    %6 = arith.cmpf ogt, %4, %5 : vector<8x128xf32>
    %7 = arith.extui %6 : vector<8x128xi1> to vector<8x128xi32>
    %8 = arith.sitofp %7 : vector<8x128xi32> to vector<8x128xf32>
    %c0_3 = arith.constant 0 : index
    %c0_4 = arith.constant 0 : index
    %c0_5 = arith.constant 0 : index
    %9 = vector.load %arg3[%c0_3, %c0_4, %c0_5] : memref<1x8x128xf32, #tpu.memory_space<vmem>>, vector<1x8x128xf32>
    %10 = vector.shape_cast %9 : vector<1x8x128xf32> to vector<8x128xf32>
    %c0_6 = arith.constant 0 : index
    %c0_7 = arith.constant 0 : index
    %11 = vector.load %arg5[%c0_6, %c0_7] : memref<8x128xf32, #tpu.memory_space<vmem>>, vector<8x128xf32>
    %12 = arith.mulf %8, %10 : vector<8x128xf32>
    %13 = arith.addf %11, %12 : vector<8x128xf32>
    %c0_8 = arith.constant 0 : index
    %c0_9 = arith.constant 0 : index
    %14 = vector.load %arg5[%c0_8, %c0_9] : memref<8x128xf32, #tpu.memory_space<vmem>>, vector<8x128xf32>
    tpu.vector_store %arg5[%c0_8, %c0_9], %13 {strides = array<i32>} : memref<8x128xf32, #tpu.memory_space<vmem>>, vector<8x128xf32>,
    %c0_10 = arith.constant 0 : index
    %c0_11 = arith.constant 0 : index
    %15 = vector.load %arg6[%c0_10, %c0_11] : memref<8x128xf32, #tpu.memory_space<vmem>>, vector<8x128xf32>
    %16 = arith.addf %15, %8 : vector<8x128xf32>
    %c0_12 = arith.constant 0 : index
    %c0_13 = arith.constant 0 : index
    %17 = vector.load %arg6[%c0_12, %c0_13] : memref<8x128xf32, #tpu.memory_space<vmem>>, vector<8x128xf32>
    tpu.vector_store %arg6[%c0_12, %c0_13], %16 {strides = array<i32>} : memref<8x128xf32, #tpu.memory_space<vmem>>, vector<8x128xf32>,
    %c0_14 = arith.constant 0 : index
    %c0_15 = arith.constant 0 : index
    %18 = vector.load %arg7[%c0_14, %c0_15] : memref<8x128xf32, #tpu.memory_space<vmem>>, vector<8x128xf32>
    %19 = arith.addf %18, %10 : vector<8x128xf32>
    %c0_16 = arith.constant 0 : index
    %c0_17 = arith.constant 0 : index
    %20 = vector.load %arg7[%c0_16, %c0_17] : memref<8x128xf32, #tpu.memory_space<vmem>>, vector<8x128xf32>
    tpu.vector_store %arg7[%c0_16, %c0_17], %19 {strides = array<i32>} : memref<8x128xf32, #tpu.memory_space<vmem>>, vector<8x128xf32>,
    %c0_i32_18 = arith.constant 0 : i32
    %21 = arith.cmpi eq, %arg1, %c0_i32_18 : i32
    %22 = arith.extui %21 : i1 to i32
    %c0_i32_19 = arith.constant 0 : i32
    %23 = arith.cmpi ne, %22, %c0_i32_19 : i32
    scf.if %23 {
      %c0_20 = arith.constant 0 : index
      %c0_21 = arith.constant 0 : index
      %24 = vector.load %arg5[%c0_20, %c0_21] : memref<8x128xf32, #tpu.memory_space<vmem>>, vector<8x128xf32>
      %25 = vector.shape_cast %24 : vector<8x128xf32> to vector<1x8x128xf32>
      %cst_22 = arith.constant dense<0.000000e+00> : vector<1xf32>
      %26 = vector.multi_reduction <add>, %25, %cst_22 [1, 2] : vector<1x8x128xf32> to vector<1xf32>
      %27 = vector.shape_cast %26 : vector<1xf32> to vector<1x1x1xf32>
      %28 = vector.extract %27[0, 0, 0] : f32 from vector<1x1x1xf32>
      %c0_23 = arith.constant 0 : index
      %c0_24 = arith.constant 0 : index
      %29 = vector.load %arg6[%c0_23, %c0_24] : memref<8x128xf32, #tpu.memory_space<vmem>>, vector<8x128xf32>
      %30 = vector.shape_cast %29 : vector<8x128xf32> to vector<1x8x128xf32>
      %cst_25 = arith.constant dense<0.000000e+00> : vector<1xf32>
      %31 = vector.multi_reduction <add>, %30, %cst_25 [1, 2] : vector<1x8x128xf32> to vector<1xf32>
      %32 = vector.shape_cast %31 : vector<1xf32> to vector<1x1x1xf32>
      %33 = vector.extract %32[0, 0, 0] : f32 from vector<1x1x1xf32>
      %c0_26 = arith.constant 0 : index
      %c0_27 = arith.constant 0 : index
      %34 = vector.load %arg7[%c0_26, %c0_27] : memref<8x128xf32, #tpu.memory_space<vmem>>, vector<8x128xf32>
      %35 = vector.shape_cast %34 : vector<8x128xf32> to vector<1x8x128xf32>
      %cst_28 = arith.constant dense<0.000000e+00> : vector<1xf32>
      %36 = vector.multi_reduction <add>, %35, %cst_28 [1, 2] : vector<1x8x128xf32> to vector<1xf32>
      %37 = vector.shape_cast %36 : vector<1xf32> to vector<1x1x1xf32>
      %38 = vector.extract %37[0, 0, 0] : f32 from vector<1x1x1xf32>
      %cst_29 = arith.constant 2.000000e+00 : f32
      %39 = arith.mulf %cst_29, %28 : f32
      %cst_30 = arith.constant 1.000000e-07 : f32
      %40 = arith.addf %39, %cst_30 : f32
      %cst_31 = arith.constant 1.000000e+00 : f32
      %41 = arith.mulf %cst_31, %38 : f32
      %42 = arith.addf %41, %33 : f32
      %cst_32 = arith.constant 1.000000e-07 : f32
      %43 = arith.addf %42, %cst_32 : f32
      %44 = arith.divf %40, %43 : f32
      %cst_33 = arith.constant 0.000000e+00 : f32
      %45 = vector.broadcast %cst_33 : f32 to vector<1x128xf32>
      %46 = vector.broadcast %44 : f32 to vector<1x128xf32>
      %47 = arith.addf %45, %46 : vector<1x128xf32>
      %c0_34 = arith.constant 0 : index
      %c0_35 = arith.constant 0 : index
      %c0_36 = arith.constant 0 : index
      %48 = vector.load %arg4[%c0_34, %c0_35, %c0_36] : memref<1x1x128xf32, #tpu.memory_space<vmem>>, vector<1x1x128xf32>
      %49 = vector.shape_cast %48 : vector<1x1x128xf32> to vector<1x128xf32>
      %50 = vector.shape_cast %47 : vector<1x128xf32> to vector<1x1x128xf32>
      tpu.vector_store %arg4[%c0_34, %c0_35, %c0_36], %50 {strides = array<i32>} : memref<1x1x128xf32, #tpu.memory_space<vmem>>, vector<1x1x128xf32>,
    } else {
    }
    return
  }
  func.func @transform_0(%arg0: i32, %arg1: i32) -> (i32, i32, i32) {
    %c0_i32 = arith.constant 0 : i32
    %c0_i32_0 = arith.constant 0 : i32
    return %arg0, %arg1, %c0_i32 : i32, i32, i32
  }
  func.func @transform_1(%arg0: i32, %arg1: i32) -> (i32, i32, i32) {
    %c0_i32 = arith.constant 0 : i32
    %c0_i32_0 = arith.constant 0 : i32
    return %arg0, %arg1, %c0_i32 : i32, i32, i32
  }
  func.func @transform_2(%arg0: i32, %arg1: i32) -> (i32, i32, i32) {
    %c0_i32 = arith.constant 0 : i32
    %c0_i32_0 = arith.constant 0 : i32
    %c0_i32_1 = arith.constant 0 : i32
    return %arg0, %c0_i32, %c0_i32_0 : i32, i32, i32
  }
}

</mosaic_0001>

<llo_original>
// kernel: tpu_custom_call.1
$region0: #{tpu_custom_call.1}
  #allocation0 [shape = 'u32[]', space=smem, size = 0x4, offset = 0x4, fixed_abs, tag = 'smem constant byte address 0x4 - core index']
  #allocation1 [shape = 'u32[144,128]{1,0:T(1,128)}', space=vmem, size = 0x12000, scoped, tag = 'internal scratch']
  #allocation2 [shape = 'f32[8,128]{1,0:T(8,128)}', space=vmem, size = 0x1000, scoped, tag = 'scratch operand']
  #allocation3 [shape = 'f32[8,128]{1,0:T(8,128)}', space=vmem, size = 0x1000, scoped, tag = 'scratch operand']
  #allocation4 [shape = 'f32[8,128]{1,0:T(8,128)}', space=vmem, size = 0x1000, scoped, tag = 'scratch operand']
  %s0 = inlined_call_operand.hbm [shape: f32[2,8,128], index: 0, kind: input, shape index: {}]
  %s1 = inlined_call_operand.hbm [shape: f32[2,8,128], index: 1, kind: input, shape index: {}]
  %s2 = inlined_call_operand.hbm [shape: f32[2,1,128], index: 2, kind: output, shape index: {}]
  %s3 = sld [smem:[#allocation0]]
  $region57: #{tpu_custom_call.1} parent=0
    _
  %s5 = ssub.s32 1, %s3
  %s6 = scalar_select 0, %s5, %s3
  $region1: #{tpu_custom_call.1} parent=0
    #allocation5 [shape = 'u8[8192]{0}', space=vmem, size = 0x2000, scoped, tag = 'input window, operand 0']
    #allocation6 [shape = 's32[2]{0}', space=sflag, size = 0x8, scoped, tag = 'scoped memory for tpu_custom_call.1']
    #allocation7 [shape = 's32[2]{0}', space=sflag, size = 0x8, scoped, tag = 'scoped memory for tpu_custom_call.1']
    #allocation8 [shape = 'u8[8192]{0}', space=vmem, size = 0x2000, scoped, tag = 'input window, operand 1']
    #allocation9 [shape = 's32[2]{0}', space=sflag, size = 0x8, scoped, tag = 'scoped memory for tpu_custom_call.1']
    #allocation10 [shape = 'u8[1024]{0}', space=vmem, size = 0x400, scoped, tag = 'output window, operand 0']
    %7 = vsyncpa [#allocation6], 0
    %s8 = scalar_lea.sflag [#allocation6], 1
    %9 = vsyncpa %s8, 0
    %10 = vsyncpa [#allocation9], 0
    %s11 = scalar_lea.sflag [#allocation9], 1
    %12 = vsyncpa %s11, 0
    %13 = vsyncpa [#allocation7], 0
    %s14 = scalar_lea.sflag [#allocation7], 1
    %15 = vsyncpa %s14, 0
    loop: start=0, step=1, limit=4
    $region2: #{tpu_custom_call.1} parent=1 // loop_pre_header
      _
    $region3: #{tpu_custom_call.1} parent=1 // loop_header
      %s17 = sphi 0, %s21
      %p18 = scmp.ge.s32.totalorder %s17, 4
      %s24 = sphi 0, %s36
      %s25 = sphi 0, %s32
      %s26 = sphi 0, %s24
      %s27 = sphi 0, %s25
      %s28 = sphi 0, %s26
      %s29 = sphi 0, %s27
      %s41 = sphi 0, %s43
      %s44 = sphi 0, %s41
      %s45 = sphi 0, %s44
      %s61 = sphi 0, %s45
      %s69 = sphi 0, %s71
      %s72 = sphi 0, %s69
      %s73 = sphi 0, %s72
      %s89 = sphi 0, %s73
      %s95 = sphi 0, %s97
      %s98 = sphi 0, %s95
      %s99 = sphi 0, %s98
      %s115 = sphi 0, %s99
    $region4: #{tpu_custom_call.1} parent=1 // loop_header_branch
      %20 = sbr.rel (%p18) target = $region8
    $region5: #{tpu_custom_call.1} parent=1 // loop_body
      %s22 = ssub.s32 %s17, 1
      %s23 = ssub.s32 %s17, 2
      %s30 = sadd.s32 1, %s25
      %p31 = scmp.ge.s32.totalorder %s30, 1
      %s32 = scalar_select %p31, 0, %s30
      %s33 = sadd.s32 1, %s24
      %s34 = scalar_select %p31, %s33, %s24
      %p35 = scmp.ge.s32.totalorder %s34, 2
      %s36 = scalar_select %p35, 0, %s34
      %s37 = ssub.s32 %s24, %s36
      %s38 = ssub.s32 %s25, %s32
      %s39 = sor.u32 %s37, %s38
      %p40 = scmp.eq.s32.totalorder %s39, 0
      %s42 = sadd.s32 %s41, 1
      %s43 = scalar_select %p40, %s41, %s42
      %p46 = pneg %p40
      %p47 = scmp.eq.s32.totalorder %s17, 1
      %p48 = por %p46, %p47
      %p49 = scmp.ne.s32.totalorder %s41, %s44
      %p50 = scmp.eq.s32.totalorder %s17, 0
      %p51 = por %p49, %p50
      %p52 = scmp.ne.s32.totalorder %s41, %s44
      %p53 = scmp.eq.s32.totalorder %s22, 1
      %p54 = por %p52, %p53
      %p55 = scmp.ne.s32.totalorder %s44, %s45
      %p56 = scmp.eq.s32.totalorder %s22, 0
      %p57 = por %p55, %p56
      %p58 = scmp.ne.s32.totalorder %s44, %s45
      %p59 = scmp.eq.s32.totalorder %s23, 1
      %p60 = por %p58, %p59
      %p62 = scmp.ne.s32.totalorder %s45, %s61
      %p63 = scmp.eq.s32.totalorder %s23, 0
      %p64 = por %p62, %p63
      %s65 = ssub.s32 %s24, %s36
      %s66 = ssub.s32 %s25, %s32
      %s67 = sor.u32 %s65, %s66
      %p68 = scmp.eq.s32.totalorder %s67, 0
      %s70 = sadd.s32 %s69, 1
      %s71 = scalar_select %p68, %s69, %s70
      %p74 = pneg %p68
      %p75 = scmp.eq.s32.totalorder %s17, 1
      %p76 = por %p74, %p75
      %p77 = scmp.ne.s32.totalorder %s69, %s72
      %p78 = scmp.eq.s32.totalorder %s17, 0
      %p79 = por %p77, %p78
      %p80 = scmp.ne.s32.totalorder %s69, %s72
      %p81 = scmp.eq.s32.totalorder %s22, 1
      %p82 = por %p80, %p81
      %p83 = scmp.ne.s32.totalorder %s72, %s73
      %p84 = scmp.eq.s32.totalorder %s22, 0
      %p85 = por %p83, %p84
      %p86 = scmp.ne.s32.totalorder %s72, %s73
      %p87 = scmp.eq.s32.totalorder %s23, 1
      %p88 = por %p86, %p87
      %p90 = scmp.ne.s32.totalorder %s73, %s89
      %p91 = scmp.eq.s32.totalorder %s23, 0
      %p92 = por %p90, %p91
      %s93 = ssub.s32 %s24, %s36
      %p94 = scmp.eq.s32.totalorder %s93, 0
      %s96 = sadd.s32 %s95, 1
      %s97 = scalar_select %p94, %s95, %s96
      %p100 = pneg %p94
      %p101 = scmp.eq.s32.totalorder %s17, 1
      %p102 = por %p100, %p101
      %p103 = scmp.ne.s32.totalorder %s95, %s98
      %p104 = scmp.eq.s32.totalorder %s17, 0
      %p105 = por %p103, %p104
      %p106 = scmp.ne.s32.totalorder %s95, %s98
      %p107 = scmp.eq.s32.totalorder %s22, 1
      %p108 = por %p106, %p107
      %p109 = scmp.ne.s32.totalorder %s98, %s99
      %p110 = scmp.eq.s32.totalorder %s22, 0
      %p111 = por %p109, %p110
      %p112 = scmp.ne.s32.totalorder %s98, %s99
      %p113 = scmp.eq.s32.totalorder %s23, 1
      %p114 = por %p112, %p113
      %p116 = scmp.ne.s32.totalorder %s99, %s115
      %p117 = scmp.eq.s32.totalorder %s23, 0
      %p118 = por %p116, %p117
      %p119 = scmp.le.s32.totalorder 1, %s17
      %p120 = scmp.lt.s32.totalorder %s17, 3
      %p121 = pnand %p119, %p120
      %p122 = pneg %p121
      // Predicated region
      $region9: #{tpu_custom_call.1} parent=5 // pred_check
        _
      $region10: #{tpu_custom_call.1} parent=5 // pred_check_branch
        %124 = sbr.rel (%p121) target = $region12
      $region11: #{tpu_custom_call.1} parent=5 // pred_region
        %s125 = ssub.s32 %s17, 1
      $region12: #{tpu_custom_call.1} parent=5 // pred_fallthru
        _
      %p126 = scmp.lt.s32.totalorder %s17, 2
      // Predicated region
      $region13: #{tpu_custom_call.1} parent=5 // pred_check
        %p127 = pneg %p126
      $region14: #{tpu_custom_call.1} parent=5 // pred_check_branch
        %129 = sbr.rel (%p127) target = $region16
      $region15: #{tpu_custom_call.1} parent=5 // pred_region
        // Predicated region
        $region17: #{tpu_custom_call.1} parent=15 // pred_check
          %p130 = pneg %p51
        $region18: #{tpu_custom_call.1} parent=15 // pred_check_branch
          %132 = sbr.rel (%p130) target = $region20
        $region19: #{tpu_custom_call.1} parent=15 // pred_region
          %s133 = sand.u32 %s41, 1
          %s134 = scalar_lea.sflag [#allocation6], %s133
          %s135 = sand.u32 %s41, 1
          %s136 = smul.addr %s135, 8
          %s137 = scalar_lea.vmem [#allocation5], %s136
          %s139 = ssub.s32 128, 128
          %140 = vsyncadd %s134, %s139
          %s141 = sadd.s32 %s25, %s24
          %s142 = smul.addr %s141, 128
          %s143 = scalar_lea.hbm %s0, %s142
          %s145 = sshll.u32 %s137, 4
          %s146 = int_to_ptr.vmem [resolvable:$true] %s145
          %148 = dma.hbm_to_vmem [thread:$0]  %s143, 128, %s146, %s134
        $region20: #{tpu_custom_call.1} parent=15 // pred_fallthru
          _
        // Predicated region
        $region21: #{tpu_custom_call.1} parent=15 // pred_check
          %p149 = pneg %p79
        $region22: #{tpu_custom_call.1} parent=15 // pred_check_branch
          %151 = sbr.rel (%p149) target = $region24
        $region23: #{tpu_custom_call.1} parent=15 // pred_region
          %s152 = sand.u32 %s69, 1
          %s153 = scalar_lea.sflag [#allocation9], %s152
          %s154 = sand.u32 %s69, 1
          %s155 = smul.addr %s154, 8
          %s156 = scalar_lea.vmem [#allocation8], %s155
          %s158 = ssub.s32 128, 128
          %159 = vsyncadd %s153, %s158
          %s160 = sadd.s32 %s25, %s24
          %s161 = smul.addr %s160, 128
          %s162 = scalar_lea.hbm %s1, %s161
          %s164 = sshll.u32 %s156, 4
          %s165 = int_to_ptr.vmem [resolvable:$true] %s164
          %167 = dma.hbm_to_vmem [thread:$0]  %s162, 128, %s165, %s153
        $region24: #{tpu_custom_call.1} parent=15 // pred_fallthru
          _
      $region16: #{tpu_custom_call.1} parent=5 // pred_fallthru
        _
      %p168 = scmp.le.s32.totalorder 1, %s17
      %p169 = scmp.lt.s32.totalorder %s17, 3
      %p170 = pnand %p168, %p169
      %p171 = pneg %p170
      // Predicated region
      $region25: #{tpu_custom_call.1} parent=5 // pred_check
        _
      $region26: #{tpu_custom_call.1} parent=5 // pred_check_branch
        %173 = sbr.rel (%p170) target = $region28
      $region27: #{tpu_custom_call.1} parent=5 // pred_region
        %s174 = ssub.s32 %s17, 1
        %s175 = sand.u32 %s44, 1
        %s176 = scalar_lea.sflag [#allocation6], %s175
        %s177 = sand.u32 %s44, 1
        %s178 = smul.addr %s177, 8
        %s179 = scalar_lea.vmem [#allocation5], %s178
        // Predicated region
        $region29: #{tpu_custom_call.1} parent=27 // pred_check
          %p180 = pneg %p57
        $region30: #{tpu_custom_call.1} parent=27 // pred_check_branch
          %182 = sbr.rel (%p180) target = $region32
        $region31: #{tpu_custom_call.1} parent=27 // pred_region
          %183 = dma.done %s176, 128
        $region32: #{tpu_custom_call.1} parent=27 // pred_fallthru
          _
        %s184 = sand.u32 %s72, 1
        %s185 = scalar_lea.sflag [#allocation9], %s184
        %s186 = sand.u32 %s72, 1
        %s187 = smul.addr %s186, 8
        %s188 = scalar_lea.vmem [#allocation8], %s187
        // Predicated region
        $region33: #{tpu_custom_call.1} parent=27 // pred_check
          %p189 = pneg %p85
        $region34: #{tpu_custom_call.1} parent=27 // pred_check_branch
          %191 = sbr.rel (%p189) target = $region36
        $region35: #{tpu_custom_call.1} parent=27 // pred_region
          %192 = dma.done %s185, 128
        $region36: #{tpu_custom_call.1} parent=27 // pred_fallthru
          _
        %s193 = sand.u32 %s44, 1
        %s194 = scalar_lea.sflag [#allocation6], %s193
        %s195 = sand.u32 %s44, 1
        %s196 = smul.addr %s195, 8
        %s197 = scalar_lea.vmem [#allocation5], %s196
        %p198 = pneg %p57
        %p199 = pneg %p54
        %s200 = sand.u32 %s72, 1
        %s201 = scalar_lea.sflag [#allocation9], %s200
        %s202 = sand.u32 %s72, 1
        %s203 = smul.addr %s202, 8
        %s204 = scalar_lea.vmem [#allocation8], %s203
        %p205 = pneg %p85
        %p206 = pneg %p82
        %p207 = pneg %p111
        %p208 = pneg %p108
        %s209 = sand.u32 %s98, 1
        %s210 = scalar_lea.sflag [#allocation7], %s209
        %s211 = sand.u32 %s98, 1
        %s212 = scalar_lea.vmem [#allocation10], %s211
        %p213 = scmp.eq.s32.totalorder %s27, 0
        // Predicated region
        $region37: #{tpu_custom_call.1} parent=27 // pred_check
          %p214 = pneg %p213
        $region38: #{tpu_custom_call.1} parent=27 // pred_check_branch
          %216 = sbr.rel (%p214) target = $region40
        $region39: #{tpu_custom_call.1} parent=27 // pred_region
          %217 = vst [vmem:[#allocation2] sm:$0xff] 0.0
          %218 = vst [vmem:[#allocation3] sm:$0xff] 0.0
          %219 = vst [vmem:[#allocation4] sm:$0xff] 0.0
        $region40: #{tpu_custom_call.1} parent=27 // pred_fallthru
          _
        %v220 = vld [vmem:[%s179] sm:$0xff]
        %vm221 = vcmp.gt.f32.partialorder %v220, 0.5
        %v222 = vsel %vm221, 1, 0
        %v223 = vcvt.s32.f32 %v222
        %v224 = vld [vmem:[%s188] sm:$0xff]
        %v225 = vld [vmem:[#allocation2] sm:$0xff]
        %v226 = vmul.f32 %v223, %v224
        %v227 = vadd.f32 %v225, %v226
        %228 = vst [vmem:[#allocation2] sm:$0xff] %v227
        %v229 = vld [vmem:[#allocation3] sm:$0xff]
        %v230 = vadd.f32 %v229, %v223
        %231 = vst [vmem:[#allocation3] sm:$0xff] %v230
        %v232 = vld [vmem:[#allocation4] sm:$0xff]
        %v233 = vadd.f32 %v232, %v224
        %234 = vst [vmem:[#allocation4] sm:$0xff] %v233
        // Predicated region
        $region41: #{tpu_custom_call.1} parent=27 // pred_check
          %p235 = pneg %p213
        $region42: #{tpu_custom_call.1} parent=27 // pred_check_branch
          %237 = sbr.rel (%p235) target = $region44
        $region43: #{tpu_custom_call.1} parent=27 // pred_region
          %v238 = vld [vmem:[#allocation2] sm:$0xff]
          %239 = vadd.xlane.f32.xlu0 %v238
          %v240 = vpop.xlane.xlu0 %239
          %v241 = vrot.slane %v240, 4
          %v242 = vadd.f32 %v240, %v241
          %v243 = vrot.slane %v242, 2
          %v244 = vadd.f32 %v242, %v243
          %v245 = vrot.slane %v244, 1
          %v246 = vadd.f32 %v244, %v245
          %s247 = vtos %v246
          %v248 = vld [vmem:[#allocation3] sm:$0xff]
          %249 = vadd.xlane.f32.xlu0 %v248
          %v250 = vpop.xlane.xlu0 %249
          %v251 = vrot.slane %v250, 4
          %v252 = vadd.f32 %v250, %v251
          %v253 = vrot.slane %v252, 2
          %v254 = vadd.f32 %v252, %v253
          %v255 = vrot.slane %v254, 1
          %v256 = vadd.f32 %v254, %v255
          %s257 = vtos %v256
          %v258 = vld [vmem:[#allocation4] sm:$0xff]
          %259 = vadd.xlane.f32.xlu0 %v258
          %v260 = vpop.xlane.xlu0 %259
          %v261 = vrot.slane %v260, 4
          %v262 = vadd.f32 %v260, %v261
          %v263 = vrot.slane %v262, 2
          %v264 = vadd.f32 %v262, %v263
          %v265 = vrot.slane %v264, 1
          %v266 = vadd.f32 %v264, %v265
          %s267 = vtos %v266
          %s268 = smul.f32 %s247, 2.0
          %s269 = sadd.f32 %s268, 1e-07
          %s270 = sadd.f32 %s267, %s257
          %s271 = sadd.f32 %s270, 1e-07
          %v272 = vstv %s271
          %v273 = vrcp.pop %v272
          %s274 = vtos %v273
          %s275 = smul.f32 %s269, %s274
          %v276 = vstv %s275
          %v277 = vadd.f32 %v276, 0.0
          %278 = vst [vmem:[%s212] sm:$0x1] %v277
        $region44: #{tpu_custom_call.1} parent=27 // pred_fallthru
          _
        %s279 = sand.u32 %s98, 1
        %s280 = scalar_lea.sflag [#allocation7], %s279
        %s281 = sand.u32 %s98, 1
        %s282 = scalar_lea.vmem [#allocation10], %s281
        // Predicated region
        $region45: #{tpu_custom_call.1} parent=27 // pred_check
          %p283 = pneg %p108
        $region46: #{tpu_custom_call.1} parent=27 // pred_check_branch
          %285 = sbr.rel (%p283) target = $region48
        $region47: #{tpu_custom_call.1} parent=27 // pred_region
          %s287 = ssub.s32 16, 16
          %288 = vsyncadd %s280, %s287
          %s289 = smul.addr %s26, 16
          %s290 = scalar_lea.hbm %s2, %s289
          %s292 = sshll.u32 %s282, 4
          %s293 = int_to_ptr.vmem [resolvable:$true] %s292
          %295 = dma.vmem_to_hbm [thread:$0]  %s293, 16, %s290, %s280
        $region48: #{tpu_custom_call.1} parent=27 // pred_fallthru
          _
      $region28: #{tpu_custom_call.1} parent=5 // pred_fallthru
        _
      %p296 = scmp.le.s32.totalorder 2, %s17
      // Predicated region
      $region49: #{tpu_custom_call.1} parent=5 // pred_check
        %p297 = pneg %p296
      $region50: #{tpu_custom_call.1} parent=5 // pred_check_branch
        %299 = sbr.rel (%p297) target = $region52
      $region51: #{tpu_custom_call.1} parent=5 // pred_region
        %s300 = ssub.s32 %s17, 2
        // Predicated region
        $region53: #{tpu_custom_call.1} parent=51 // pred_check
          %p301 = pneg %p114
        $region54: #{tpu_custom_call.1} parent=51 // pred_check_branch
          %303 = sbr.rel (%p301) target = $region56
        $region55: #{tpu_custom_call.1} parent=51 // pred_region
          %s304 = sand.u32 %s99, 1
          %s305 = scalar_lea.sflag [#allocation7], %s304
          %s306 = sand.u32 %s99, 1
          %s307 = scalar_lea.vmem [#allocation10], %s306
          %308 = dma.done %s305, 16
        $region56: #{tpu_custom_call.1} parent=51 // pred_fallthru
          _
      $region52: #{tpu_custom_call.1} parent=5 // pred_fallthru
        _
    $region6: #{tpu_custom_call.1} parent=1 // loop_footer
      %s21 = sadd.s32 1, %s17
    $region7: #{tpu_custom_call.1} parent=1 // loop_footer_branch
      %16 = sbr.rel target = $region3
    $region8: #{tpu_custom_call.1} parent=1 // loop_exit
      _
    %309 = vsyncpa [#allocation6], 1
    %s310 = scalar_lea.sflag [#allocation6], 1
    %311 = vsyncpa %s310, 1
    %312 = vsyncpa [#allocation9], 1
    %s313 = scalar_lea.sflag [#allocation9], 1
    %314 = vsyncpa %s313, 1
    %315 = vsyncpa [#allocation7], 1
    %s316 = scalar_lea.sflag [#allocation7], 1
    %317 = vsyncpa %s316, 1

</llo_original>
